<compile_context>
chip_gen: v6e
topology: v6e:2x2x1
jax: 0.10.0
libtpu: 0.0.40
codegen_flags: <defaults>
</compile_context>

<pallas_src>
import functools

import jax
import jax.numpy as jnp
from jax.experimental import pallas as pl
from jax.experimental.pallas import tpu as pltpu


def _loss1_kernel(sim_ref, w_row_ref, wt_col_ref, p_ref):
    # W_row @ W_col^T on the MXU, f32 accumulation.
    ww = jnp.dot(w_row_ref[...], wt_col_ref[...],
                 preferred_element_type=jnp.float32)          # (tn, tc)
    # Upcast the streamed sim tile (possibly bf16) to f32, then subtract.
    r = sim_ref[...].astype(jnp.float32) - ww
    sq = r * r

    tn, tc = sq.shape
    # Row-block accumulate: (tn, tc) -> (8, tc).  Splitting the leading axis
    # keeps the (sublane, lane) layout intact; the sum is pure VPU vreg adds.
    sq8 = sq.reshape(tn // 8, 8, tc).sum(axis=0)              # (8, tc)
    # Lane-group accumulate with 128-aligned static slices (whole vregs),
    # again pure VPU adds -- no XLU reduce, no scalar broadcast.
    acc = sq8[:, 0:128]
    for g in range(1, tc // 128):
        acc = acc + sq8[:, g * 128:(g + 1) * 128]
    p_ref[0, 0] = acc                                         # (8, 128), f32


def _round_up(x, m):
    return ((x + m - 1) // m) * m


def _pad2(x, rows, cols):
    pr, pc = rows - x.shape[0], cols - x.shape[1]
    if pr or pc:
        x = jnp.pad(x, ((0, pr), (0, pc)))
    return x


@functools.partial(jax.jit,
                   static_argnames=("max_tile_n", "max_tile_c"))
def nsnmf_forward(sim, feature, W, H, alpha=1.0, gamma=1.0,
                  max_tile_n=256, max_tile_c=4096):
    feature = jnp.asarray(feature, jnp.float32)
    W = jnp.asarray(W, jnp.float32)
    H = jnp.asarray(H, jnp.float32)

    n, k = W.shape
    assert sim.shape == (n, n)
    assert feature.shape[0] == n and H.shape[0] == k

    # sim is streamed at its incoming dtype (pass bf16 to halve HBM traffic).
    sim_dtype = sim.dtype
    sim_bytes = jnp.dtype(sim_dtype).itemsize

    # ---- Tile selection: grow tile_c (lane / contiguous-DMA axis) first. ----
    max_tile_n = max(8, (max_tile_n // 8) * 8)
    max_tile_c = max(128, (max_tile_c // 128) * 128)
    tile_c = min(max_tile_c, _round_up(n, 128))   # lane axis, mult of 128
    tile_n = min(max_tile_n, _round_up(n, 8))     # sublane axis, mult of 8
    n_row = _round_up(n, tile_n)
    n_col = _round_up(n, tile_c)
    gi, gj = n_row // tile_n, n_col // tile_c

    # ---- Loss-preserving zero padding (padded sim & padded W rows give a
    #      residual of exactly 0 in the padded region). ----
    sim_p = _pad2(sim, n_row, n_col)
    w_row = _pad2(W, n_row, k)
    wt_col = _pad2(W.T, k, n_col)                 # W pre-transposed once

    # ---- VMEM budget derived from the per-step footprint. ----
    per_step = (2 * tile_n * tile_c * sim_bytes    # sim tile, double-buffered
                + 2 * tile_n * k * 4               # W row tile
                + 2 * k * tile_c * 4               # W^T col tile
                + 2 * 8 * 128 * 4                  # output block
                + 3 * tile_n * tile_c * 4)         # ww / residual intermediates
    vmem_limit = max(32 * 1024 * 1024,
                     min(48 * 1024 * 1024, per_step + 16 * 1024 * 1024))

    p1 = pl.pallas_call(
        _loss1_kernel,
        out_shape=jax.ShapeDtypeStruct((gi, gj, 8, 128), jnp.float32),
        grid_spec=pltpu.PrefetchScalarGridSpec(
            num_scalar_prefetch=0,
            grid=(gi, gj),
            in_specs=[
                pl.BlockSpec((tile_n, tile_c), lambda i, j: (i, j)),  # sim tile
                pl.BlockSpec((tile_n, k), lambda i, j: (i, 0)),       # W rows
                pl.BlockSpec((k, tile_c), lambda i, j: (0, j)),       # W^T cols
            ],
            out_specs=pl.BlockSpec((1, 1, 8, 128), lambda i, j: (i, j, 0, 0)),
        ),
        compiler_params=pltpu.CompilerParams(
            dimension_semantics=("parallel", "parallel"),
            vmem_limit_bytes=vmem_limit,
        ),
    )(sim_p, w_row, wt_col)

    loss_1 = jnp.sqrt(jnp.sum(p1))
    # loss_2 / loss_3 are tiny; keep them in plain XLA glue (feature is read
    # from HBM exactly once either way, and this frees VMEM for the sim tile).
    loss_2 = jnp.sqrt(jnp.sum(jnp.square(feature - W @ H))) * alpha
    loss_3 = (jnp.sqrt(jnp.sum(W * W)) + jnp.sqrt(jnp.sum(H * H))) * gamma
    return loss_3 + loss_2 + loss_1


def _reference(sim, feature, W, H, alpha=1.0, gamma=1.0):
    l1 = jnp.sqrt(jnp.sum(jnp.square(sim - W @ W.T)))
    l2 = jnp.sqrt(jnp.sum(jnp.square(feature - W @ H))) * alpha
    l3 = (jnp.sqrt(jnp.sum(jnp.square(W))) + jnp.sqrt(jnp.sum(jnp.square(H)))) * gamma
    return l3 + l2 + l1


if __name__ == "__main__":
    # Small shapes consistent with the module: n nodes, k clusters, in_dim feats.
    n, k_dim, in_dim = 256, 16, 128

    key = jax.random.PRNGKey(0)
    k1, k2, k3, k4 = jax.random.split(key, 4)
    # Deterministic stand-ins for nn.Parameter(torch.randn(...)).
    W = jax.random.normal(k1, (n, k_dim), dtype=jnp.float32)
    H = jax.random.normal(k2, (k_dim, in_dim), dtype=jnp.float32)
    # Forward inputs.
    sim = jax.random.normal(k3, (n, n), dtype=jnp.float32)
    feature = jax.random.normal(k4, (n, in_dim), dtype=jnp.float32)

    ref = _reference(sim, feature, W, H, alpha=1.0, gamma=1.0)

    # 1) f32 sim, single large tile (tile_c == padded n -> fully contiguous DMA).
    loss_f32 = jax.block_until_ready(
        nsnmf_forward(sim, feature, W, H, alpha=1.0, gamma=1.0))
    assert jnp.allclose(loss_f32, ref, rtol=1e-4, atol=1e-3), (loss_f32, ref)

    # 2) f32 sim, forced 4x2 grid to exercise the tiled per-lane partial sums.
    loss_tiled = jax.block_until_ready(
        nsnmf_forward(sim, feature, W, H, alpha=1.0, gamma=1.0,
                      max_tile_n=64, max_tile_c=128))
    assert jnp.allclose(loss_tiled, ref, rtol=1e-4, atol=1e-3), (loss_tiled, ref)

    # 3) bf16-streamed sim (caller casts once): ~2x less HBM traffic in the
    #    kernel; accumulation stays f32, so only ~1e-3 relative drift.
    loss_bf16 = jax.block_until_ready(
        nsnmf_forward(sim.astype(jnp.bfloat16), feature, W, H,
                      alpha=1.0, gamma=1.0))
    assert jnp.allclose(loss_bf16, ref, rtol=1e-2, atol=1e-1), (loss_bf16, ref)

    # 4) Awkward n that needs zero-padding on both grid axes.
    n2 = 200
    W2 = jax.random.normal(k1, (n2, k_dim), dtype=jnp.float32)
    sim2 = jax.random.normal(k3, (n2, n2), dtype=jnp.float32)
    feat2 = jax.random.normal(k4, (n2, in_dim), dtype=jnp.float32)
    ref2 = _reference(sim2, feat2, W2, H, alpha=1.0, gamma=1.0)
    loss_pad = jax.block_until_ready(
        nsnmf_forward(sim2, feat2, W2, H, alpha=1.0, gamma=1.0,
                      max_tile_n=64, max_tile_c=128))
    assert jnp.allclose(loss_pad, ref2, rtol=1e-4, atol=1e-3), (loss_pad, ref2)

    print("KERNEL_OK")
</pallas_src>

<mosaic_0001>
module attributes {stable_mosaic.version = 11 : i64} {
  func.func @_loss1_kernel(%arg0: i32, %arg1: i32, %arg2: memref<256x256xf32, #tpu.memory_space<vmem>>, %arg3: memref<256x16xf32, #tpu.memory_space<vmem>>, %arg4: memref<16x256xf32, #tpu.memory_space<vmem>>, %arg5: memref<1x1x8x128xf32, #tpu.memory_space<vmem>>) attributes {dimension_semantics = [#tpu.dimension_semantics<parallel>, #tpu.dimension_semantics<parallel>], iteration_bounds = array<i64: 1, 1>, scalar_prefetch = 0 : i64, scratch_operands = 0 : i64, tpu.core_type = #tpu.core_type<tc>, window_params = [{transform_indices = @transform_0, window_bounds = array<i64: 256, 256>}, {transform_indices = @transform_1, window_bounds = array<i64: 256, 16>}, {transform_indices = @transform_2, window_bounds = array<i64: 16, 256>}, {transform_indices = @transform_3, window_bounds = array<i64: 1, 1, 8, 128>}]} {
    %c0 = arith.constant 0 : index
    %c0_0 = arith.constant 0 : index
    %0 = vector.load %arg3[%c0, %c0_0] : memref<256x16xf32, #tpu.memory_space<vmem>>, vector<256x16xf32>
    %c0_1 = arith.constant 0 : index
    %c0_2 = arith.constant 0 : index
    %1 = vector.load %arg4[%c0_1, %c0_2] : memref<16x256xf32, #tpu.memory_space<vmem>>, vector<16x256xf32>
    %cst = arith.constant dense<0.000000e+00> : vector<256x256xf32>
    %2 = tpu.matmul %0, %1, %cst {dimension_numbers = #tpu.dot_dimension_numbers<[1], [0], [0], [1], [0, 0, 1, 1], [], []>} : vector<256x16xf32>, vector<16x256xf32>, vector<256x256xf32> -> vector<256x256xf32>
    %c0_3 = arith.constant 0 : index
    %c0_4 = arith.constant 0 : index
    %3 = vector.load %arg2[%c0_3, %c0_4] : memref<256x256xf32, #tpu.memory_space<vmem>>, vector<256x256xf32>
    %4 = arith.subf %3, %2 : vector<256x256xf32>
    %5 = arith.mulf %4, %4 : vector<256x256xf32>
    %6 = vector.shape_cast %5 : vector<256x256xf32> to vector<32x8x256xf32>
    %cst_5 = arith.constant dense<0.000000e+00> : vector<8x256xf32>
    %7 = vector.multi_reduction <add>, %6, %cst_5 [0] : vector<32x8x256xf32> to vector<8x256xf32>
    %8 = vector.extract_strided_slice %7 {offsets = [0, 0], sizes = [8, 128], strides = [1, 1]} : vector<8x256xf32> to vector<8x128xf32>
    %9 = vector.extract_strided_slice %7 {offsets = [0, 128], sizes = [8, 128], strides = [1, 1]} : vector<8x256xf32> to vector<8x128xf32>
    %10 = arith.addf %8, %9 : vector<8x128xf32>
    %c0_6 = arith.constant 0 : index
    %c0_7 = arith.constant 0 : index
    %c0_8 = arith.constant 0 : index
    %c0_9 = arith.constant 0 : index
    %11 = vector.load %arg5[%c0_6, %c0_7, %c0_8, %c0_9] : memref<1x1x8x128xf32, #tpu.memory_space<vmem>>, vector<1x1x8x128xf32>
    %12 = vector.shape_cast %11 : vector<1x1x8x128xf32> to vector<8x128xf32>
    %13 = vector.shape_cast %10 : vector<8x128xf32> to vector<1x1x8x128xf32>
    tpu.vector_store %arg5[%c0_6, %c0_7, %c0_8, %c0_9], %13 {strides = array<i32>} : memref<1x1x8x128xf32, #tpu.memory_space<vmem>>, vector<1x1x8x128xf32>,
    return
  }
  func.func @transform_0(%arg0: i32, %arg1: i32) -> (i32, i32) {
    %c0_i32 = arith.constant 0 : i32
    return %arg0, %arg1 : i32, i32
  }
  func.func @transform_1(%arg0: i32, %arg1: i32) -> (i32, i32) {
    %c0_i32 = arith.constant 0 : i32
    %c0_i32_0 = arith.constant 0 : i32
    return %arg0, %c0_i32 : i32, i32
  }
  func.func @transform_2(%arg0: i32, %arg1: i32) -> (i32, i32) {
    %c0_i32 = arith.constant 0 : i32
    %c0_i32_0 = arith.constant 0 : i32
    return %c0_i32, %arg1 : i32, i32
  }
  func.func @transform_3(%arg0: i32, %arg1: i32) -> (i32, i32, i32, i32) {
    %c0_i32 = arith.constant 0 : i32
    %c0_i32_0 = arith.constant 0 : i32
    %c0_i32_1 = arith.constant 0 : i32
    return %arg0, %arg1, %c0_i32, %c0_i32_0 : i32, i32, i32, i32
  }
}

</mosaic_0001>

<llo_original>
// kernel: nsnmf_forward.1
$region0: #{nsnmf_forward.1}
  #allocation0 [shape = 'u32[]', space=smem, size = 0x4, offset = 0x4, fixed_abs, tag = 'smem constant byte address 0x4 - core index']
  #allocation1 [shape = 'u32[144,128]{1,0:T(1,128)}', space=vmem, size = 0x12000, scoped, tag = 'internal scratch']
  %s0 = inlined_call_operand.hbm [shape: f32[256,256], index: 0, kind: input, shape index: {}]
  %s1 = inlined_call_operand.vmem [shape: f32[256,16], index: 1, kind: input, shape index: {}]
  %s2 = inlined_call_operand.vmem [shape: f32[16,256], index: 2, kind: input, shape index: {}]
  %s3 = inlined_call_operand.vmem [shape: f32[1,1,8,128], index: 3, kind: output, shape index: {}]
  %s4 = sld [smem:[#allocation0]]
  $region26: #{nsnmf_forward.1} parent=0
    _
  %s6 = ssub.s32 1, %s4
  %s7 = scalar_select 0, %s6, %s4
  $region1: #{nsnmf_forward.1} parent=0
    #allocation2 [shape = 'u8[262144]{0}', space=vmem, size = 0x40000, scoped, tag = 'input window, operand 0, single buffered']
    #allocation3 [shape = 's32[1]{0}', space=sflag, size = 0x4, scoped, tag = 'scoped memory for nsnmf_forward.1']
    %8 = vsyncpa [#allocation3], 0
    // Predicated region
    $region2: #{nsnmf_forward.1} parent=1 // pred_check
      _
    $region3: #{nsnmf_forward.1} parent=1 // pred_check_branch
      %10 = sbr.rel (0) target = $region5
    $region4: #{nsnmf_forward.1} parent=1 // pred_region
      %s12 = ssub.s32 8192, 8192
      %13 = vsyncadd [#allocation3], %s12
      %s14 = sshll.u32 [#allocation2], 4
      %s15 = int_to_ptr.vmem [resolvable:$true] %s14
      %20 = dma.hbm_to_vmem [thread:$0]  %s0, 8192, %s15, [#allocation3], 256, 256, 16
    $region5: #{nsnmf_forward.1} parent=1 // pred_fallthru
      _
    // Predicated region
    $region6: #{nsnmf_forward.1} parent=1 // pred_check
      _
    $region7: #{nsnmf_forward.1} parent=1 // pred_check_branch
      %22 = sbr.rel (0) target = $region9
    $region8: #{nsnmf_forward.1} parent=1 // pred_region
      _
    $region9: #{nsnmf_forward.1} parent=1 // pred_fallthru
      _
    // Predicated region
    $region10: #{nsnmf_forward.1} parent=1 // pred_check
      _
    $region11: #{nsnmf_forward.1} parent=1 // pred_check_branch
      %24 = sbr.rel (0) target = $region13
    $region12: #{nsnmf_forward.1} parent=1 // pred_region
      _
    $region13: #{nsnmf_forward.1} parent=1 // pred_fallthru
      _
    // Predicated region
    $region14: #{nsnmf_forward.1} parent=1 // pred_check
      _
    $region15: #{nsnmf_forward.1} parent=1 // pred_check_branch
      %26 = sbr.rel (0) target = $region17
    $region16: #{nsnmf_forward.1} parent=1 // pred_region
      %27 = dma.done [#allocation3], 8192
    $region17: #{nsnmf_forward.1} parent=1 // pred_fallthru
      _
    %v28 = vld [vmem:[%s1] sm:$0xff]
    %v29 = vld [vmem:[%s1 + $0x8] sm:$0xff]
    %v30 = vld [vmem:[%s1 + $0x10] sm:$0xff]
    %v31 = vld [vmem:[%s1 + $0x18] sm:$0xff]
    %v32 = vld [vmem:[%s1 + $0x20] sm:$0xff]
    %v33 = vld [vmem:[%s1 + $0x28] sm:$0xff]
    %v34 = vld [vmem:[%s1 + $0x30] sm:$0xff]
    %v35 = vld [vmem:[%s1 + $0x38] sm:$0xff]
    %v36 = vld [vmem:[%s1 + $0x40] sm:$0xff]
    %v37 = vld [vmem:[%s1 + $0x48] sm:$0xff]
    %v38 = vld [vmem:[%s1 + $0x50] sm:$0xff]
    %v39 = vld [vmem:[%s1 + $0x58] sm:$0xff]
    %v40 = vld [vmem:[%s1 + $0x60] sm:$0xff]
    %v41 = vld [vmem:[%s1 + $0x68] sm:$0xff]
    %v42 = vld [vmem:[%s1 + $0x70] sm:$0xff]
    %v43 = vld [vmem:[%s1 + $0x78] sm:$0xff]
    %v44 = vld [vmem:[%s1 + $0x80] sm:$0xff]
    %v45 = vld [vmem:[%s1 + $0x88] sm:$0xff]
    %v46 = vld [vmem:[%s1 + $0x90] sm:$0xff]
    %v47 = vld [vmem:[%s1 + $0x98] sm:$0xff]
    %v48 = vld [vmem:[%s1 + $0xa0] sm:$0xff]
    %v49 = vld [vmem:[%s1 + $0xa8] sm:$0xff]
    %v50 = vld [vmem:[%s1 + $0xb0] sm:$0xff]
    %v51 = vld [vmem:[%s1 + $0xb8] sm:$0xff]
    %v52 = vld [vmem:[%s1 + $0xc0] sm:$0xff]
    %v53 = vld [vmem:[%s1 + $0xc8] sm:$0xff]
    %v54 = vld [vmem:[%s1 + $0xd0] sm:$0xff]
    %v55 = vld [vmem:[%s1 + $0xd8] sm:$0xff]
    %v56 = vld [vmem:[%s1 + $0xe0] sm:$0xff]
    %v57 = vld [vmem:[%s1 + $0xe8] sm:$0xff]
    %v58 = vld [vmem:[%s1 + $0xf0] sm:$0xff]
    %v59 = vld [vmem:[%s1 + $0xf8] sm:$0xff]
    %v60 = vld [vmem:[%s2] sm:$0xff]
    %v61 = vld [vmem:[%s2 + $0x8] sm:$0xff]
    %v62 = vld [vmem:[%s2 + $0x10] sm:$0xff]
    %v63 = vld [vmem:[%s2 + $0x18] sm:$0xff]
    %vm64 = vcmask 130048
    %v66 = vsel %vm64, %v28, 0
    %v69 = vsel %vm64, %v29, 0
    %v72 = vsel %vm64, %v30, 0
    %v75 = vsel %vm64, %v31, 0
    %v78 = vsel %vm64, %v32, 0
    %v81 = vsel %vm64, %v33, 0
    %v84 = vsel %vm64, %v34, 0
    %v87 = vsel %vm64, %v35, 0
    %v90 = vsel %vm64, %v36, 0
    %v93 = vsel %vm64, %v37, 0
    %v96 = vsel %vm64, %v38, 0
    %v99 = vsel %vm64, %v39, 0
    %v102 = vsel %vm64, %v40, 0
    %v105 = vsel %vm64, %v41, 0
    %v108 = vsel %vm64, %v42, 0
    %v111 = vsel %vm64, %v43, 0
    %v114 = vsel %vm64, %v44, 0
    %v117 = vsel %vm64, %v45, 0
    %v120 = vsel %vm64, %v46, 0
    %v123 = vsel %vm64, %v47, 0
    %v126 = vsel %vm64, %v48, 0
    %v129 = vsel %vm64, %v49, 0
    %v132 = vsel %vm64, %v50, 0
    %v135 = vsel %vm64, %v51, 0
    %v138 = vsel %vm64, %v52, 0
    %v141 = vsel %vm64, %v53, 0
    %v144 = vsel %vm64, %v54, 0
    %v147 = vsel %vm64, %v55, 0
    %v150 = vsel %vm64, %v56, 0
    %v153 = vsel %vm64, %v57, 0
    %v156 = vsel %vm64, %v58, 0
    %v159 = vsel %vm64, %v59, 0
    %161 = vmatprep.subr.mxu0 0.0
    %162 = vmatpush1.msra.mxu0 0.0
    %163 = vmatprep.subr.mxu0 0.0
    %164 = vmatpush1.msra.mxu0 0.0
    %165 = vmatprep.subr.mxu0 0.0
    %166 = vmatpush1.msra.mxu0 0.0
    %167 = vmatprep.subr.mxu0 0.0
    %168 = vmatpush1.msra.mxu0 0.0
    %169 = vmatprep.subr.mxu0 0.0
    %170 = vmatpush1.msra.mxu0 0.0
    %171 = vmatprep.subr.mxu0 0.0
    %172 = vmatpush1.msra.mxu0 0.0
    %173 = vmatprep.subr.mxu0 0.0
    %174 = vmatpush1.msra.mxu0 0.0
    %175 = vmatprep.subr.mxu0 0.0
    %176 = vmatpush1.msra.mxu0 0.0
    %177 = vmatprep.subr.mxu0 0.0
    %178 = vmatpush1.msra.mxu0 0.0
    %179 = vmatprep.subr.mxu0 0.0
    %180 = vmatpush1.msra.mxu0 0.0
    %181 = vmatprep.subr.mxu0 0.0
    %182 = vmatpush1.msra.mxu0 0.0
    %183 = vmatprep.subr.mxu0 0.0
    %184 = vmatpush1.msra.mxu0 0.0
    %185 = vmatprep.subr.mxu0 0.0
    %186 = vmatpush1.msra.mxu0 0.0
    %187 = vmatprep.subr.mxu0 0.0
    %188 = vmatpush1.msra.mxu0 0.0
    %189 = vmatprep.subr.mxu0 %v63
    %190 = vmatpush1.msra.mxu0 %v62
    %191 = vmatprep.subr.mxu0 %v61
    %192 = vmatpush1.msra.mxu0 %v60
    %193 = vmatprep.subr.mxu0 0.0
    %194 = vmatpush2.msra.mxu0 0.0
    %195 = vmatprep.subr.mxu0 0.0
    %196 = vmatpush2.msra.mxu0 0.0
    %197 = vmatprep.subr.mxu0 0.0
    %198 = vmatpush2.msra.mxu0 0.0
    %199 = vmatprep.subr.mxu0 0.0
    %200 = vmatpush2.msra.mxu0 0.0
    %201 = vmatprep.subr.mxu0 0.0
    %202 = vmatpush2.msra.mxu0 0.0
    %203 = vmatprep.subr.mxu0 0.0
    %204 = vmatpush2.msra.mxu0 0.0
    %205 = vmatprep.subr.mxu0 0.0
    %206 = vmatpush2.msra.mxu0 0.0
    %207 = vmatprep.subr.mxu0 0.0
    %208 = vmatpush2.msra.mxu0 0.0
    %209 = vmatprep.subr.mxu0 0.0
    %210 = vmatpush2.msra.mxu0 0.0
    %211 = vmatprep.subr.mxu0 0.0
    %212 = vmatpush2.msra.mxu0 0.0
    %213 = vmatprep.subr.mxu0 0.0
    %214 = vmatpush2.msra.mxu0 0.0
    %215 = vmatprep.subr.mxu0 0.0
    %216 = vmatpush2.msra.mxu0 0.0
    %217 = vmatprep.subr.mxu0 0.0
    %218 = vmatpush2.msra.mxu0 0.0
    %219 = vmatprep.subr.mxu0 0.0
    %220 = vmatpush2.msra.mxu0 0.0
    %221 = vmatprep.subr.mxu0 0.0
    %222 = vmatpush2.msra.mxu0 0.0
    %223 = vmatprep.subr.mxu0 0.0
    %224 = vmatpush2.msra.mxu0 0.0
    %225 = vmatprep.mubr.f32.mxu0 0.0
    %226 = vmatmul.mubr.f32.gmra.mxu0 %v66
    %v227 = vpop.f32.mrf.mxu0
    %v228 = vadd.f32 0.0, %v227
    %v229 = vpop.f32.mrf.mxu0
    %v230 = vadd.f32 0.0, %v229
    %231 = vmatprep.mubr.f32.mxu0 0.0
    %232 = vmatmul.mubr.f32.gmra.mxu0 %v69
    %v233 = vpop.f32.mrf.mxu0
    %v234 = vadd.f32 0.0, %v233
    %v235 = vpop.f32.mrf.mxu0
    %v236 = vadd.f32 0.0, %v235
    %237 = vmatprep.mubr.f32.mxu0 0.0
    %238 = vmatmul.mubr.f32.gmra.mxu0 %v72
    %v239 = vpop.f32.mrf.mxu0
    %v240 = vadd.f32 0.0, %v239
    %v241 = vpop.f32.mrf.mxu0
    %v242 = vadd.f32 0.0, %v241
    %243 = vmatprep.mubr.f32.mxu0 0.0
    %244 = vmatmul.mubr.f32.gmra.mxu0 %v75
    %v245 = vpop.f32.mrf.mxu0
    %v246 = vadd.f32 0.0, %v245
    %v247 = vpop.f32.mrf.mxu0
    %v248 = vadd.f32 0.0, %v247
    %249 = vmatprep.mubr.f32.mxu0 0.0
    %250 = vmatmul.mubr.f32.gmra.mxu0 %v78
    %v251 = vpop.f32.mrf.mxu0
    %v252 = vadd.f32 0.0, %v251
    %v253 = vpop.f32.mrf.mxu0
    %v254 = vadd.f32 0.0, %v253
    %255 = vmatprep.mubr.f32.mxu0 0.0
    %256 = vmatmul.mubr.f32.gmra.mxu0 %v81
    %v257 = vpop.f32.mrf.mxu0
    %v258 = vadd.f32 0.0, %v257
    %v259 = vpop.f32.mrf.mxu0
    %v260 = vadd.f32 0.0, %v259
    %261 = vmatprep.mubr.f32.mxu0 0.0
    %262 = vmatmul.mubr.f32.gmra.mxu0 %v84
    %v263 = vpop.f32.mrf.mxu0
    %v264 = vadd.f32 0.0, %v263
    %v265 = vpop.f32.mrf.mxu0
    %v266 = vadd.f32 0.0, %v265
    %267 = vmatprep.mubr.f32.mxu0 0.0
    %268 = vmatmul.mubr.f32.gmra.mxu0 %v87
    %v269 = vpop.f32.mrf.mxu0
    %v270 = vadd.f32 0.0, %v269
    %v271 = vpop.f32.mrf.mxu0
    %v272 = vadd.f32 0.0, %v271
    %273 = vmatprep.mubr.f32.mxu0 0.0
    %274 = vmatmul.mubr.f32.gmra.mxu0 %v90
    %v275 = vpop.f32.mrf.mxu0
    %v276 = vadd.f32 0.0, %v275
    %v277 = vpop.f32.mrf.mxu0
    %v278 = vadd.f32 0.0, %v277
    %279 = vmatprep.mubr.f32.mxu0 0.0
    %280 = vmatmul.mubr.f32.gmra.mxu0 %v93
    %v281 = vpop.f32.mrf.mxu0
    %v282 = vadd.f32 0.0, %v281
    %v283 = vpop.f32.mrf.mxu0
    %v284 = vadd.f32 0.0, %v283
    %285 = vmatprep.mubr.f32.mxu0 0.0
    %286 = vmatmul.mubr.f32.gmra.mxu0 %v96
    %v287 = vpop.f32.mrf.mxu0
    %v288 = vadd.f32 0.0, %v287
    %v289 = vpop.f32.mrf.mxu0
    %v290 = vadd.f32 0.0, %v289
    %291 = vmatprep.mubr.f32.mxu0 0.0
    %292 = vmatmul.mubr.f32.gmra.mxu0 %v99
    %v293 = vpop.f32.mrf.mxu0
    %v294 = vadd.f32 0.0, %v293
    %v295 = vpop.f32.mrf.mxu0
    %v296 = vadd.f32 0.0, %v295
    %297 = vmatprep.mubr.f32.mxu0 0.0
    %298 = vmatmul.mubr.f32.gmra.mxu0 %v102
    %v299 = vpop.f32.mrf.mxu0
    %v300 = vadd.f32 0.0, %v299
    %v301 = vpop.f32.mrf.mxu0
    %v302 = vadd.f32 0.0, %v301
    %303 = vmatprep.mubr.f32.mxu0 0.0
    %304 = vmatmul.mubr.f32.gmra.mxu0 %v105
    %v305 = vpop.f32.mrf.mxu0
    %v306 = vadd.f32 0.0, %v305
    %v307 = vpop.f32.mrf.mxu0
    %v308 = vadd.f32 0.0, %v307
    %309 = vmatprep.mubr.f32.mxu0 0.0
    %310 = vmatmul.mubr.f32.gmra.mxu0 %v108
    %v311 = vpop.f32.mrf.mxu0
    %v312 = vadd.f32 0.0, %v311
    %v313 = vpop.f32.mrf.mxu0
    %v314 = vadd.f32 0.0, %v313
    %315 = vmatprep.mubr.f32.mxu0 0.0
    %316 = vmatmul.mubr.f32.gmra.mxu0 %v111
    %v317 = vpop.f32.mrf.mxu0
    %v318 = vadd.f32 0.0, %v317
    %v319 = vpop.f32.mrf.mxu0
    %v320 = vadd.f32 0.0, %v319
    %321 = vmatprep.mubr.f32.mxu0 0.0
    %322 = vmatmul.mubr.f32.gmra.mxu0 %v114
    %v323 = vpop.f32.mrf.mxu0
    %v324 = vadd.f32 0.0, %v323
    %v325 = vpop.f32.mrf.mxu0
    %v326 = vadd.f32 0.0, %v325
    %327 = vmatprep.mubr.f32.mxu0 0.0
    %328 = vmatmul.mubr.f32.gmra.mxu0 %v117
    %v329 = vpop.f32.mrf.mxu0
    %v330 = vadd.f32 0.0, %v329
    %v331 = vpop.f32.mrf.mxu0
    %v332 = vadd.f32 0.0, %v331
    %333 = vmatprep.mubr.f32.mxu0 0.0
    %334 = vmatmul.mubr.f32.gmra.mxu0 %v120
    %v335 = vpop.f32.mrf.mxu0
    %v336 = vadd.f32 0.0, %v335
    %v337 = vpop.f32.mrf.mxu0
    %v338 = vadd.f32 0.0, %v337
    %339 = vmatprep.mubr.f32.mxu0 0.0
    %340 = vmatmul.mubr.f32.gmra.mxu0 %v123
    %v341 = vpop.f32.mrf.mxu0
    %v342 = vadd.f32 0.0, %v341
    %v343 = vpop.f32.mrf.mxu0
    %v344 = vadd.f32 0.0, %v343
    %345 = vmatprep.mubr.f32.mxu0 0.0
    %346 = vmatmul.mubr.f32.gmra.mxu0 %v126
    %v347 = vpop.f32.mrf.mxu0
    %v348 = vadd.f32 0.0, %v347
    %v349 = vpop.f32.mrf.mxu0
    %v350 = vadd.f32 0.0, %v349
    %351 = vmatprep.mubr.f32.mxu0 0.0
    %352 = vmatmul.mubr.f32.gmra.mxu0 %v129
    %v353 = vpop.f32.mrf.mxu0
    %v354 = vadd.f32 0.0, %v353
    %v355 = vpop.f32.mrf.mxu0
    %v356 = vadd.f32 0.0, %v355
    %357 = vmatprep.mubr.f32.mxu0 0.0
    %358 = vmatmul.mubr.f32.gmra.mxu0 %v132
    %v359 = vpop.f32.mrf.mxu0
    %v360 = vadd.f32 0.0, %v359
    %v361 = vpop.f32.mrf.mxu0
    %v362 = vadd.f32 0.0, %v361
    %363 = vmatprep.mubr.f32.mxu0 0.0
    %364 = vmatmul.mubr.f32.gmra.mxu0 %v135
    %v365 = vpop.f32.mrf.mxu0
    %v366 = vadd.f32 0.0, %v365
    %v367 = vpop.f32.mrf.mxu0
    %v368 = vadd.f32 0.0, %v367
    %369 = vmatprep.mubr.f32.mxu0 0.0
    %370 = vmatmul.mubr.f32.gmra.mxu0 %v138
    %v371 = vpop.f32.mrf.mxu0
    %v372 = vadd.f32 0.0, %v371
    %v373 = vpop.f32.mrf.mxu0
    %v374 = vadd.f32 0.0, %v373
    %375 = vmatprep.mubr.f32.mxu0 0.0
    %376 = vmatmul.mubr.f32.gmra.mxu0 %v141
    %v377 = vpop.f32.mrf.mxu0
    %v378 = vadd.f32 0.0, %v377
    %v379 = vpop.f32.mrf.mxu0
    %v380 = vadd.f32 0.0, %v379
    %381 = vmatprep.mubr.f32.mxu0 0.0
    %382 = vmatmul.mubr.f32.gmra.mxu0 %v144
    %v383 = vpop.f32.mrf.mxu0
    %v384 = vadd.f32 0.0, %v383
    %v385 = vpop.f32.mrf.mxu0
    %v386 = vadd.f32 0.0, %v385
    %387 = vmatprep.mubr.f32.mxu0 0.0
    %388 = vmatmul.mubr.f32.gmra.mxu0 %v147
    %v389 = vpop.f32.mrf.mxu0
    %v390 = vadd.f32 0.0, %v389
    %v391 = vpop.f32.mrf.mxu0
    %v392 = vadd.f32 0.0, %v391
    %393 = vmatprep.mubr.f32.mxu0 0.0
    %394 = vmatmul.mubr.f32.gmra.mxu0 %v150
    %v395 = vpop.f32.mrf.mxu0
    %v396 = vadd.f32 0.0, %v395
    %v397 = vpop.f32.mrf.mxu0
    %v398 = vadd.f32 0.0, %v397
    %399 = vmatprep.mubr.f32.mxu0 0.0
    %400 = vmatmul.mubr.f32.gmra.mxu0 %v153
    %v401 = vpop.f32.mrf.mxu0
    %v402 = vadd.f32 0.0, %v401
    %v403 = vpop.f32.mrf.mxu0
    %v404 = vadd.f32 0.0, %v403
    %405 = vmatprep.mubr.f32.mxu0 0.0
    %406 = vmatmul.mubr.f32.gmra.mxu0 %v156
    %v407 = vpop.f32.mrf.mxu0
    %v408 = vadd.f32 0.0, %v407
    %v409 = vpop.f32.mrf.mxu0
    %v410 = vadd.f32 0.0, %v409
    %411 = vmatprep.mubr.f32.mxu0 0.0
    %412 = vmatmul.mubr.f32.gmra.mxu0 %v159
    %v413 = vpop.f32.mrf.mxu0
    %v414 = vadd.f32 0.0, %v413
    %v415 = vpop.f32.mrf.mxu0
    %v416 = vadd.f32 0.0, %v415
    %417 = vdwg.mxu0
    %v418 = vld [vmem:[#allocation2] sm:$0xff]
    %v419 = vld [vmem:[#allocation2 + $0x8] sm:$0xff]
    %v420 = vld [vmem:[#allocation2 + $0x10] sm:$0xff]
    %v421 = vld [vmem:[#allocation2 + $0x18] sm:$0xff]
    %v422 = vld [vmem:[#allocation2 + $0x20] sm:$0xff]
    %v423 = vld [vmem:[#allocation2 + $0x28] sm:$0xff]
    %v424 = vld [vmem:[#allocation2 + $0x30] sm:$0xff]
    %v425 = vld [vmem:[#allocation2 + $0x38] sm:$0xff]
    %v426 = vld [vmem:[#allocation2 + $0x40] sm:$0xff]
    %v427 = vld [vmem:[#allocation2 + $0x48] sm:$0xff]
    %v428 = vld [vmem:[#allocation2 + $0x50] sm:$0xff]
    %v429 = vld [vmem:[#allocation2 + $0x58] sm:$0xff]
    %v430 = vld [vmem:[#allocation2 + $0x60] sm:$0xff]
    %v431 = vld [vmem:[#allocation2 + $0x68] sm:$0xff]
    %v432 = vld [vmem:[#allocation2 + $0x70] sm:$0xff]
    %v433 = vld [vmem:[#allocation2 + $0x78] sm:$0xff]
    %v434 = vld [vmem:[#allocation2 + $0x80] sm:$0xff]
    %v435 = vld [vmem:[#allocation2 + $0x88] sm:$0xff]
    %v436 = vld [vmem:[#allocation2 + $0x90] sm:$0xff]
    %v437 = vld [vmem:[#allocation2 + $0x98] sm:$0xff]
    %v438 = vld [vmem:[#allocation2 + $0xa0] sm:$0xff]
    %v439 = vld [vmem:[#allocation2 + $0xa8] sm:$0xff]
    %v440 = vld [vmem:[#allocation2 + $0xb0] sm:$0xff]
    %v441 = vld [vmem:[#allocation2 + $0xb8] sm:$0xff]
    %v442 = vld [vmem:[#allocation2 + $0xc0] sm:$0xff]
    %v443 = vld [vmem:[#allocation2 + $0xc8] sm:$0xff]
    %v444 = vld [vmem:[#allocation2 + $0xd0] sm:$0xff]
    %v445 = vld [vmem:[#allocation2 + $0xd8] sm:$0xff]
    %v446 = vld [vmem:[#allocation2 + $0xe0] sm:$0xff]
    %v447 = vld [vmem:[#allocation2 + $0xe8] sm:$0xff]
    %v448 = vld [vmem:[#allocation2 + $0xf0] sm:$0xff]
    %v449 = vld [vmem:[#allocation2 + $0xf8] sm:$0xff]
    %v450 = vld [vmem:[#allocation2 + $0x100] sm:$0xff]
    %v451 = vld [vmem:[#allocation2 + $0x108] sm:$0xff]
    %v452 = vld [vmem:[#allocation2 + $0x110] sm:$0xff]
    %v453 = vld [vmem:[#allocation2 + $0x118] sm:$0xff]
    %v454 = vld [vmem:[#allocation2 + $0x120] sm:$0xff]
    %v455 = vld [vmem:[#allocation2 + $0x128] sm:$0xff]
    %v456 = vld [vmem:[#allocation2 + $0x130] sm:$0xff]
    %v457 = vld [vmem:[#allocation2 + $0x138] sm:$0xff]
    %v458 = vld [vmem:[#allocation2 + $0x140] sm:$0xff]
    %v459 = vld [vmem:[#allocation2 + $0x148] sm:$0xff]
    %v460 = vld [vmem:[#allocation2 + $0x150] sm:$0xff]
    %v461 = vld [vmem:[#allocation2 + $0x158] sm:$0xff]
    %v462 = vld [vmem:[#allocation2 + $0x160] sm:$0xff]
    %v463 = vld [vmem:[#allocation2 + $0x168] sm:$0xff]
    %v464 = vld [vmem:[#allocation2 + $0x170] sm:$0xff]
    %v465 = vld [vmem:[#allocation2 + $0x178] sm:$0xff]
    %v466 = vld [vmem:[#allocation2 + $0x180] sm:$0xff]
    %v467 = vld [vmem:[#allocation2 + $0x188] sm:$0xff]
    %v468 = vld [vmem:[#allocation2 + $0x190] sm:$0xff]
    %v469 = vld [vmem:[#allocation2 + $0x198] sm:$0xff]
    %v470 = vld [vmem:[#allocation2 + $0x1a0] sm:$0xff]
    %v471 = vld [vmem:[#allocation2 + $0x1a8] sm:$0xff]
    %v472 = vld [vmem:[#allocation2 + $0x1b0] sm:$0xff]
    %v473 = vld [vmem:[#allocation2 + $0x1b8] sm:$0xff]
    %v474 = vld [vmem:[#allocation2 + $0x1c0] sm:$0xff]
    %v475 = vld [vmem:[#allocation2 + $0x1c8] sm:$0xff]
    %v476 = vld [vmem:[#allocation2 + $0x1d0] sm:$0xff]
    %v477 = vld [vmem:[#allocation2 + $0x1d8] sm:$0xff]
    %v478 = vld [vmem:[#allocation2 + $0x1e0] sm:$0xff]
    %v479 = vld [vmem:[#allocation2 + $0x1e8] sm:$0xff]
    %v480 = vld [vmem:[#allocation2 + $0x1f0] sm:$0xff]
    %v481 = vld [vmem:[#allocation2 + $0x1f8] sm:$0xff]
    %v482 = vsub.f32 %v418, %v228
    %v483 = vsub.f32 %v419, %v230
    %v484 = vsub.f32 %v420, %v234
    %v485 = vsub.f32 %v421, %v236
    %v486 = vsub.f32 %v422, %v240
    %v487 = vsub.f32 %v423, %v242
    %v488 = vsub.f32 %v424, %v246
    %v489 = vsub.f32 %v425, %v248
    %v490 = vsub.f32 %v426, %v252
    %v491 = vsub.f32 %v427, %v254
    %v492 = vsub.f32 %v428, %v258
    %v493 = vsub.f32 %v429, %v260
    %v494 = vsub.f32 %v430, %v264
    %v495 = vsub.f32 %v431, %v266
    %v496 = vsub.f32 %v432, %v270
    %v497 = vsub.f32 %v433, %v272
    %v498 = vsub.f32 %v434, %v276
    %v499 = vsub.f32 %v435, %v278
    %v500 = vsub.f32 %v436, %v282
    %v501 = vsub.f32 %v437, %v284
    %v502 = vsub.f32 %v438, %v288
    %v503 = vsub.f32 %v439, %v290
    %v504 = vsub.f32 %v440, %v294
    %v505 = vsub.f32 %v441, %v296
    %v506 = vsub.f32 %v442, %v300
    %v507 = vsub.f32 %v443, %v302
    %v508 = vsub.f32 %v444, %v306
    %v509 = vsub.f32 %v445, %v308
    %v510 = vsub.f32 %v446, %v312
    %v511 = vsub.f32 %v447, %v314
    %v512 = vsub.f32 %v448, %v318
    %v513 = vsub.f32 %v449, %v320
    %v514 = vsub.f32 %v450, %v324
    %v515 = vsub.f32 %v451, %v326
    %v516 = vsub.f32 %v452, %v330
    %v517 = vsub.f32 %v453, %v332
    %v518 = vsub.f32 %v454, %v336
    %v519 = vsub.f32 %v455, %v338
    %v520 = vsub.f32 %v456, %v342
    %v521 = vsub.f32 %v457, %v344
    %v522 = vsub.f32 %v458, %v348
    %v523 = vsub.f32 %v459, %v350
    %v524 = vsub.f32 %v460, %v354
    %v525 = vsub.f32 %v461, %v356
    %v526 = vsub.f32 %v462, %v360
    %v527 = vsub.f32 %v463, %v362
    %v528 = vsub.f32 %v464, %v366
    %v529 = vsub.f32 %v465, %v368
    %v530 = vsub.f32 %v466, %v372
    %v531 = vsub.f32 %v467, %v374
    %v532 = vsub.f32 %v468, %v378
    %v533 = vsub.f32 %v469, %v380
    %v534 = vsub.f32 %v470, %v384
    %v535 = vsub.f32 %v471, %v386
    %v536 = vsub.f32 %v472, %v390
    %v537 = vsub.f32 %v473, %v392
    %v538 = vsub.f32 %v474, %v396
    %v539 = vsub.f32 %v475, %v398
    %v540 = vsub.f32 %v476, %v402
    %v541 = vsub.f32 %v477, %v404
    %v542 = vsub.f32 %v478, %v408
    %v543 = vsub.f32 %v479, %v410
    %v544 = vsub.f32 %v480, %v414
    %v545 = vsub.f32 %v481, %v416
    %v546 = vmul.f32 %v482, %v482
    %v547 = vmul.f32 %v483, %v483
    %v548 = vmul.f32 %v484, %v484
    %v549 = vmul.f32 %v485, %v485
    %v550 = vmul.f32 %v486, %v486
    %v551 = vmul.f32 %v487, %v487
    %v552 = vmul.f32 %v488, %v488
    %v553 = vmul.f32 %v489, %v489
    %v554 = vmul.f32 %v490, %v490
    %v555 = vmul.f32 %v491, %v491
    %v556 = vmul.f32 %v492, %v492
    %v557 = vmul.f32 %v493, %v493
    %v558 = vmul.f32 %v494, %v494
    %v559 = vmul.f32 %v495, %v495
    %v560 = vmul.f32 %v496, %v496
    %v561 = vmul.f32 %v497, %v497
    %v562 = vmul.f32 %v498, %v498
    %v563 = vmul.f32 %v499, %v499
    %v564 = vmul.f32 %v500, %v500
    %v565 = vmul.f32 %v501, %v501
    %v566 = vmul.f32 %v502, %v502
    %v567 = vmul.f32 %v503, %v503
    %v568 = vmul.f32 %v504, %v504
    %v569 = vmul.f32 %v505, %v505
    %v570 = vmul.f32 %v506, %v506
    %v571 = vmul.f32 %v507, %v507
    %v572 = vmul.f32 %v508, %v508
    %v573 = vmul.f32 %v509, %v509
    %v574 = vmul.f32 %v510, %v510
    %v575 = vmul.f32 %v511, %v511
    %v576 = vmul.f32 %v512, %v512
    %v577 = vmul.f32 %v513, %v513
    %v578 = vmul.f32 %v514, %v514
    %v579 = vmul.f32 %v515, %v515
    %v580 = vmul.f32 %v516, %v516
    %v581 = vmul.f32 %v517, %v517
    %v582 = vmul.f32 %v518, %v518
    %v583 = vmul.f32 %v519, %v519
    %v584 = vmul.f32 %v520, %v520
    %v585 = vmul.f32 %v521, %v521
    %v586 = vmul.f32 %v522, %v522
    %v587 = vmul.f32 %v523, %v523
    %v588 = vmul.f32 %v524, %v524
    %v589 = vmul.f32 %v525, %v525
    %v590 = vmul.f32 %v526, %v526
    %v591 = vmul.f32 %v527, %v527
    %v592 = vmul.f32 %v528, %v528
    %v593 = vmul.f32 %v529, %v529
    %v594 = vmul.f32 %v530, %v530
    %v595 = vmul.f32 %v531, %v531
    %v596 = vmul.f32 %v532, %v532
    %v597 = vmul.f32 %v533, %v533
    %v598 = vmul.f32 %v534, %v534
    %v599 = vmul.f32 %v535, %v535
    %v600 = vmul.f32 %v536, %v536
    %v601 = vmul.f32 %v537, %v537
    %v602 = vmul.f32 %v538, %v538
    %v603 = vmul.f32 %v539, %v539
    %v604 = vmul.f32 %v540, %v540
    %v605 = vmul.f32 %v541, %v541
    %v606 = vmul.f32 %v542, %v542
    %v607 = vmul.f32 %v543, %v543
    %v608 = vmul.f32 %v544, %v544
    %v609 = vmul.f32 %v545, %v545
    %v610 = vadd.f32 %v546, %v548
    %v611 = vadd.f32 %v610, %v550
    %v612 = vadd.f32 %v611, %v552
    %v613 = vadd.f32 %v612, %v554
    %v614 = vadd.f32 %v613, %v556
    %v615 = vadd.f32 %v614, %v558
    %v616 = vadd.f32 %v615, %v560
    %v617 = vadd.f32 %v616, %v562
    %v618 = vadd.f32 %v617, %v564
    %v619 = vadd.f32 %v618, %v566
    %v620 = vadd.f32 %v619, %v568
    %v621 = vadd.f32 %v620, %v570
    %v622 = vadd.f32 %v621, %v572
    %v623 = vadd.f32 %v622, %v574
    %v624 = vadd.f32 %v623, %v576
    %v625 = vadd.f32 %v624, %v578
    %v626 = vadd.f32 %v625, %v580
    %v627 = vadd.f32 %v626, %v582
    %v628 = vadd.f32 %v627, %v584
    %v629 = vadd.f32 %v628, %v586
    %v630 = vadd.f32 %v629, %v588
    %v631 = vadd.f32 %v630, %v590
    %v632 = vadd.f32 %v631, %v592
    %v633 = vadd.f32 %v632, %v594
    %v634 = vadd.f32 %v633, %v596
    %v635 = vadd.f32 %v634, %v598
    %v636 = vadd.f32 %v635, %v600
    %v637 = vadd.f32 %v636, %v602
    %v638 = vadd.f32 %v637, %v604
    %v639 = vadd.f32 %v638, %v606
    %v640 = vadd.f32 %v639, %v608
    %v641 = vadd.f32 %v547, %v549
    %v642 = vadd.f32 %v641, %v551
    %v643 = vadd.f32 %v642, %v553
    %v644 = vadd.f32 %v643, %v555
    %v645 = vadd.f32 %v644, %v557
    %v646 = vadd.f32 %v645, %v559
    %v647 = vadd.f32 %v646, %v561
    %v648 = vadd.f32 %v647, %v563
    %v649 = vadd.f32 %v648, %v565
    %v650 = vadd.f32 %v649, %v567
    %v651 = vadd.f32 %v650, %v569
    %v652 = vadd.f32 %v651, %v571
    %v653 = vadd.f32 %v652, %v573
    %v654 = vadd.f32 %v653, %v575
    %v655 = vadd.f32 %v654, %v577
    %v656 = vadd.f32 %v655, %v579
    %v657 = vadd.f32 %v656, %v581
    %v658 = vadd.f32 %v657, %v583
    %v659 = vadd.f32 %v658, %v585
    %v660 = vadd.f32 %v659, %v587
    %v661 = vadd.f32 %v660, %v589
    %v662 = vadd.f32 %v661, %v591
    %v663 = vadd.f32 %v662, %v593
    %v664 = vadd.f32 %v663, %v595
    %v665 = vadd.f32 %v664, %v597
    %v666 = vadd.f32 %v665, %v599
    %v667 = vadd.f32 %v666, %v601
    %v668 = vadd.f32 %v667, %v603
    %v669 = vadd.f32 %v668, %v605
    %v670 = vadd.f32 %v669, %v607
    %v671 = vadd.f32 %v670, %v609
    %v672 = vadd.f32 %v640, %v671
    %673 = vst [vmem:[%s3] sm:$0xff] %v672
    // Predicated region
    $region18: #{nsnmf_forward.1} parent=1 // pred_check
      _
    $region19: #{nsnmf_forward.1} parent=1 // pred_check_branch
      %675 = sbr.rel (0) target = $region21
    $region20: #{nsnmf_forward.1} parent=1 // pred_region
      _
    $region21: #{nsnmf_forward.1} parent=1 // pred_fallthru
      _
    // Predicated region
    $region22: #{nsnmf_forward.1} parent=1 // pred_check
      _
    $region23: #{nsnmf_forward.1} parent=1 // pred_check_branch
      %677 = sbr.rel (0) target = $region25
    $region24: #{nsnmf_forward.1} parent=1 // pred_region
      _
    $region25: #{nsnmf_forward.1} parent=1 // pred_fallthru
      _
    %678 = vsyncpa [#allocation3], 1

</llo_original>
